<compile_context>
chip_gen: v7x
topology: tpu7x:2x2x1
jax: 0.10.0
libtpu: 0.0.40
codegen_flags: <defaults>
</compile_context>

<pallas_src>
import jax
import jax.numpy as jnp
from jax import lax
from jax.experimental import pallas as pl
from jax.experimental.pallas import tpu as pltpu


_PAR2 = pltpu.CompilerParams(dimension_semantics=("parallel", "parallel"))


# ---------------------------------------------------------------------------
# Pallas kernels
# ---------------------------------------------------------------------------

def _make_conv_kernel(out_w):
    """3x3 conv, one output row per grid step, + BN partial statistics.

    Refs per step:
      x0/x1/x2_ref : (1, 1, Wp, Cin)  padded rows h, h+1, h+2
      w_ref        : (3, 3, Cin, Cout)
      y_ref        : (1, 1, W, Cout)  raw conv output (f32, pre-BN)
      s_ref/ss_ref : (1, 1, 1, Cout)  per-row sum / sum-of-squares (f32)
    """
    def kernel(x0_ref, x1_ref, x2_ref, w_ref, y_ref, s_ref, ss_ref):
        acc = None
        for ky, x_ref in enumerate((x0_ref, x1_ref, x2_ref)):
            row = x_ref[0, 0]                       # (Wp, Cin)
            for kx in range(3):
                a = row[kx:kx + out_w, :]           # (W, Cin) shifted tap
                c = jnp.dot(a, w_ref[ky, kx],
                            preferred_element_type=jnp.float32)
                acc = c if acc is None else acc + c
        y_ref[0, 0] = acc.astype(y_ref.dtype)
        s_ref[0, 0] = jnp.sum(acc, axis=0, keepdims=True)
        ss_ref[0, 0] = jnp.sum(acc * acc, axis=0, keepdims=True)
    return kernel


def _bn_act_kernel(y_ref, scale_ref, shift_ref, o_ref):
    """BN pass 2: y*scale + shift, ReLU (f32 math, cast at store)."""
    y = y_ref[0, 0].astype(jnp.float32)
    v = jnp.maximum(y * scale_ref[...] + shift_ref[...], 0.0)
    o_ref[0, 0] = v.astype(o_ref.dtype)


def _make_unpool_kernel(in_w, chans, out_w, apply_act):
    """MaxUnpool2d(2,2) for one pooled row, optionally fusing the previous
    layer's BN-normalize + ReLU into the input load.

    Output block: (1, 1, 2, W, 2*C); the trailing (W, 2*C) slab is lane-dense
    (dx interleaved into the channel axis), so the final reshape to
    (B, 2H, 2W, C) is a contiguous, free view.
    """
    def kernel(x_ref, ind_ref, scale_ref, shift_ref, o_ref):
        h = pl.program_id(1)
        x = x_ref[0, 0].astype(jnp.float32)                      # (W, C)
        if apply_act:
            x = jnp.maximum(x * scale_ref[...] + shift_ref[...], 0.0)
        v = x.astype(o_ref.dtype)
        ind = ind_ref[0, 0]                                      # (W, C) int32
        col = lax.broadcasted_iota(jnp.int32, (in_w, chans), 0)  # w index
        base = 2 * col + (2 * h) * out_w                         # idx of (2h,2w)
        zero = jnp.zeros_like(v)
        for dy in range(2):
            planes = [jnp.where(ind == base + (dy * out_w + dx), v, zero)
                      for dx in range(2)]
            o_ref[0, 0, dy] = jnp.concatenate(planes, axis=-1)   # (W, 2C)
    return kernel


# ---------------------------------------------------------------------------
# Pallas wrappers
# ---------------------------------------------------------------------------

def conv3x3_stats(x, w):
    """x: (B, H, W, Cin) in compute dtype. w: (3, 3, Cin, Cout) HWIO.

    Returns raw conv output (f32) and per-row BN partial sums (f32)."""
    B, H, W, Cin = x.shape
    Cout = w.shape[-1]
    w = w.astype(x.dtype)
    xp = jnp.pad(x, ((0, 0), (1, 1), (1, 1), (0, 0)))
    Wp = W + 2

    def row_spec(ky):
        return pl.BlockSpec((1, 1, Wp, Cin),
                            lambda b, h, ky=ky: (b, h + ky, 0, 0))

    y, s, ss = pl.pallas_call(
        _make_conv_kernel(W),
        grid=(B, H),
        in_specs=[row_spec(0), row_spec(1), row_spec(2),
                  pl.BlockSpec((3, 3, Cin, Cout), lambda b, h: (0, 0, 0, 0))],
        out_specs=(pl.BlockSpec((1, 1, W, Cout), lambda b, h: (b, h, 0, 0)),
                   pl.BlockSpec((1, 1, 1, Cout), lambda b, h: (b, h, 0, 0)),
                   pl.BlockSpec((1, 1, 1, Cout), lambda b, h: (b, h, 0, 0))),
        out_shape=(jax.ShapeDtypeStruct((B, H, W, Cout), jnp.float32),
                   jax.ShapeDtypeStruct((B, H, 1, Cout), jnp.float32),
                   jax.ShapeDtypeStruct((B, H, 1, Cout), jnp.float32)),
        compiler_params=_PAR2,
    )(xp, xp, xp, w)
    return y, s, ss


def _bn_affine(s, ss, gamma, beta, count):
    """Reduce per-row partials -> per-channel BN scale/shift (f32, tiny)."""
    total = jnp.sum(s, axis=(0, 1, 2))
    total_sq = jnp.sum(ss, axis=(0, 1, 2))
    mean = total / count
    var = jnp.maximum(total_sq / count - mean * mean, 0.0)
    inv = lax.rsqrt(var + 1e-5)
    scale = gamma.astype(jnp.float32) * inv
    shift = beta.astype(jnp.float32) - mean * scale
    return scale, shift


def bn_act(y, scale, shift, out_dtype):
    """Tiled BN pass 2 (normalize + ReLU).  y: (B, H, W, C) f32."""
    B, H, W, C = y.shape
    return pl.pallas_call(
        _bn_act_kernel,
        grid=(B, H),
        in_specs=[pl.BlockSpec((1, 1, W, C), lambda b, h: (b, h, 0, 0)),
                  pl.BlockSpec((1, C), lambda b, h: (0, 0)),
                  pl.BlockSpec((1, C), lambda b, h: (0, 0))],
        out_specs=pl.BlockSpec((1, 1, W, C), lambda b, h: (b, h, 0, 0)),
        out_shape=jax.ShapeDtypeStruct((B, H, W, C), out_dtype),
        compiler_params=_PAR2,
    )(y, scale.reshape(1, C), shift.reshape(1, C))


def max_unpool_2x2(x, ind, out_h, out_w, scale, shift, apply_act, out_dtype):
    """x, ind: (B, H, W, C) NHWC; returns (B, out_h, out_w, C) in out_dtype.

    If apply_act, the previous layer's BN-normalize + ReLU (scale/shift) is
    fused into the load (zeros stay zero under the scatter, so this is exact).
    """
    B, H, W, C = x.shape
    # TODO(synk): general MaxUnpool2d output_size (non-exact-2x) unsupported;
    # assumes exact 2x upsampling from a 2x2/stride-2 encoder pool.
    assert out_h == 2 * H and out_w == 2 * W

    out5 = pl.pallas_call(
        _make_unpool_kernel(W, C, out_w, apply_act),
        grid=(B, H),
        in_specs=[pl.BlockSpec((1, 1, W, C), lambda b, h: (b, h, 0, 0)),
                  pl.BlockSpec((1, 1, W, C), lambda b, h: (b, h, 0, 0)),
                  pl.BlockSpec((1, C), lambda b, h: (0, 0)),
                  pl.BlockSpec((1, C), lambda b, h: (0, 0))],
        out_specs=pl.BlockSpec((1, 1, 2, W, 2 * C),
                               lambda b, h: (b, h, 0, 0, 0)),
        out_shape=jax.ShapeDtypeStruct((B, H, 2, W, 2 * C), out_dtype),
        compiler_params=_PAR2,
    )(x, ind, scale.reshape(1, C), shift.reshape(1, C))
    # Contiguous (free) view: (B, H, 2, W, 2*C) -> (B, 2H, 2W, C).
    return out5.reshape(B, out_h, out_w, C)


def conv_bn_stats(x, w, gamma, beta):
    B, H, W, _ = x.shape
    y, s, ss = conv3x3_stats(x, w)
    scale, shift = _bn_affine(s, ss, gamma, beta, float(B * H * W))
    return y, scale, shift


def block_forward(p, x):
    """Returns (raw conv2 output, scale2, shift2); the final BN+ReLU is left
    pending so it can be fused into the consumer (next unpool or final pass).
    Conv biases are intentionally unused: they cancel under batch-stat BN."""
    y1, sc1, sh1 = conv_bn_stats(x, p["w1"], p["g1"], p["beta1"])
    a1 = bn_act(y1, sc1, sh1, x.dtype)
    y2, sc2, sh2 = conv_bn_stats(a1, p["w2"], p["g2"], p["beta2"])
    return y2, sc2, sh2


def decoder_forward(params, x_nchw, ind_nchw, maxpool_out,
                    compute_dtype=jnp.float32):
    """Pallas implementation of DecoderForVGG16.forward (NCHW in / NCHW out)."""
    x_raw = jnp.transpose(x_nchw, (0, 2, 3, 1)).astype(jnp.float32)
    ind = jnp.transpose(ind_nchw, (0, 2, 3, 1)).astype(jnp.int32)
    C = x_raw.shape[-1]
    scale = jnp.ones((C,), jnp.float32)
    shift = jnp.zeros((C,), jnp.float32)
    apply_act = False                       # no pending BN on the decoder input
    for i in range(len(params)):
        out_size = maxpool_out[i][0].shape  # (B, C, OH, OW): spatial only
        x_up = max_unpool_2x2(x_raw, ind, out_size[2], out_size[3],
                              scale, shift, apply_act, out_dtype=compute_dtype)
        ind = jnp.transpose(maxpool_out[i][1], (0, 2, 3, 1)).astype(jnp.int32)
        x_raw, scale, shift = block_forward(params[i], x_up)
        apply_act = True
    x_out = bn_act(x_raw, scale, shift, jnp.float32)   # final pending BN+ReLU
    return (jnp.transpose(x_out, (0, 3, 1, 2)), jnp.transpose(ind, (0, 3, 1, 2)))


# ---------------------------------------------------------------------------
# Deterministic parameter init (scaled-down channel widths)
# ---------------------------------------------------------------------------

def init_params(key, channels):
    io = [(channels[0], channels[0])] + [(channels[i], channels[i + 1])
                                         for i in range(1, len(channels) - 1)]
    params = []
    for cin, cout in io:
        key, k1, k2, k3, k4 = jax.random.split(key, 5)
        params.append({
            # b1/b2 are used only by the reference; the Pallas path drops them
            # (exactly cancelled by training-mode BatchNorm mean subtraction).
            "w1": 0.1 * jax.random.normal(k1, (3, 3, cin, cout), jnp.float32),
            "b1": 0.1 * jax.random.normal(k2, (cout,), jnp.float32),
            "g1": jnp.ones((cout,), jnp.float32),
            "beta1": jnp.zeros((cout,), jnp.float32),
            "w2": 0.1 * jax.random.normal(k3, (3, 3, cout, cout), jnp.float32),
            "b2": 0.1 * jax.random.normal(k4, (cout,), jnp.float32),
            "g2": jnp.ones((cout,), jnp.float32),
            "beta2": jnp.zeros((cout,), jnp.float32),
        })
    return params


# ---------------------------------------------------------------------------
# Pure-JAX reference (NCHW, mirrors the PyTorch module exactly)
# ---------------------------------------------------------------------------

def _unpool_ref(x, ind, OH, OW):
    B, C, H, W = x.shape
    out = jnp.zeros((B, C, OH * OW), x.dtype)
    out = jax.vmap(jax.vmap(lambda o, i, v: o.at[i].set(v)))(
        out, ind.reshape(B, C, H * W), x.reshape(B, C, H * W))
    return out.reshape(B, C, OH, OW)


def _conv_bn_relu_ref(x, w, b, g, beta):
    y = lax.conv_general_dilated(
        x, w, (1, 1), "SAME",
        dimension_numbers=("NCHW", "HWIO", "NCHW"),
        precision=lax.Precision.HIGHEST)
    y = y + b.reshape(1, -1, 1, 1)
    mean = jnp.mean(y, axis=(0, 2, 3), keepdims=True)
    var = jnp.mean(jnp.square(y - mean), axis=(0, 2, 3), keepdims=True)
    y = (y - mean) * lax.rsqrt(var + 1e-5)
    y = y * g.reshape(1, -1, 1, 1) + beta.reshape(1, -1, 1, 1)
    return jnp.maximum(y, 0.0)


def decoder_forward_ref(params, x, ind, maxpool_out):
    ind = ind.astype(jnp.int32)
    for i in range(len(params)):
        s = maxpool_out[i][0].shape
        x = _unpool_ref(x, ind, s[2], s[3])
        ind = maxpool_out[i][1].astype(jnp.int32)
        p = params[i]
        x = _conv_bn_relu_ref(x, p["w1"], p["b1"], p["g1"], p["beta1"])
        x = _conv_bn_relu_ref(x, p["w2"], p["b2"], p["g2"], p["beta2"])
    return x, ind


# ---------------------------------------------------------------------------
# main
# ---------------------------------------------------------------------------

def make_indices(key, B, C, H, W):
    """Valid 2x2/stride-2 max-pool indices: flat index into (2H, 2W)."""
    k1, k2 = jax.random.split(key)
    dy = jax.random.randint(k1, (B, C, H, W), 0, 2)
    dx = jax.random.randint(k2, (B, C, H, W), 0, 2)
    h = jnp.arange(H).reshape(1, 1, H, 1)
    w = jnp.arange(W).reshape(1, 1, 1, W)
    return ((2 * h + dy) * (2 * W) + (2 * w + dx)).astype(jnp.int32)


if __name__ == "__main__":
    channels = (16, 16, 8, 8, 8)   # scaled-down stand-in for (512,512,256,128,64)
    B, H0, W0 = 2, 2, 2

    root = jax.random.PRNGKey(0)
    kp, kx, ki, km = jax.random.split(root, 4)

    params = init_params(kp, channels)
    x = jax.random.normal(kx, (B, channels[0], H0, W0), jnp.float32)
    ind = make_indices(ki, B, channels[0], H0, W0)

    # maxpool_out[i] = (tensor whose .size() gives the unpool output size,
    #                   pooling indices consumed by the NEXT iteration)
    maxpool_out = []
    H = H0
    for i in range(len(channels) - 1):
        km, k = jax.random.split(km)
        OH = 2 * H
        size_tensor = jnp.zeros((B, channels[i], OH, OH), jnp.float32)
        next_ind = make_indices(k, B, channels[i + 1], OH, OH)
        maxpool_out.append((size_tensor, next_ind))
        H = OH

    # --- f32 compute path: strict correctness check ------------------------
    out, out_ind = decoder_forward(params, x, ind, maxpool_out,
                                   compute_dtype=jnp.float32)
    out = jax.block_until_ready(out)
    out_ind = jax.block_until_ready(out_ind)

    ref_out, ref_ind = decoder_forward_ref(params, x, ind, maxpool_out)
    assert out.shape == (B, channels[-1], 16 * H0, 16 * W0), out.shape
    err_f32 = float(jnp.max(jnp.abs(out - ref_out)))
    assert jnp.allclose(out, ref_out, atol=5e-3, rtol=5e-3), err_f32
    assert jnp.array_equal(out_ind, ref_ind)

    # --- bf16 MXU path (perf config for v6e/v7x): f32 accumulation + f32 BN
    # statistics keep it close to the f32 reference; loose sanity bound. -----
    out_bf16, _ = decoder_forward(params, x, ind, maxpool_out,
                                  compute_dtype=jnp.bfloat16)
    out_bf16 = jax.block_until_ready(out_bf16)
    err_bf16 = float(jnp.max(jnp.abs(out_bf16.astype(jnp.float32) - ref_out)))
    assert bool(jnp.all(jnp.isfinite(out_bf16)))
    assert err_bf16 < 0.5, err_bf16

    print("KERNEL_OK")
</pallas_src>

<mosaic_0001>
module attributes {stable_mosaic.version = 11 : i64} {
  func.func @kernel(%arg0: i32, %arg1: i32, %arg2: memref<1x1x2x16xf32, #tpu.memory_space<vmem>>, %arg3: memref<1x1x2x16xi32, #tpu.memory_space<vmem>>, %arg4: memref<1x16xf32, #tpu.memory_space<vmem>>, %arg5: memref<1x16xf32, #tpu.memory_space<vmem>>, %arg6: memref<1x1x2x2x32xf32, #tpu.memory_space<vmem>>) attributes {dimension_semantics = [#tpu.dimension_semantics<parallel>, #tpu.dimension_semantics<parallel>], iteration_bounds = array<i64: 2, 2>, scalar_prefetch = 0 : i64, scratch_operands = 0 : i64, tpu.core_type = #tpu.core_type<tc>, window_params = [{transform_indices = @transform_0, window_bounds = array<i64: 1, 1, 2, 16>}, {transform_indices = @transform_1, window_bounds = array<i64: 1, 1, 2, 16>}, {pipeline_mode = #tpu.pipeline_mode<synchronous>, transform_indices = @transform_2, window_bounds = array<i64: 1, 16>}, {pipeline_mode = #tpu.pipeline_mode<synchronous>, transform_indices = @transform_3, window_bounds = array<i64: 1, 16>}, {transform_indices = @transform_4, window_bounds = array<i64: 1, 1, 2, 2, 32>}]} {
    %c0 = arith.constant 0 : index
    %c0_0 = arith.constant 0 : index
    %c0_1 = arith.constant 0 : index
    %c0_2 = arith.constant 0 : index
    %0 = vector.load %arg2[%c0, %c0_0, %c0_1, %c0_2] : memref<1x1x2x16xf32, #tpu.memory_space<vmem>>, vector<1x1x2x16xf32>
    %1 = vector.shape_cast %0 : vector<1x1x2x16xf32> to vector<2x16xf32>
    %c0_3 = arith.constant 0 : index
    %c0_4 = arith.constant 0 : index
    %c0_5 = arith.constant 0 : index
    %c0_6 = arith.constant 0 : index
    %2 = vector.load %arg3[%c0_3, %c0_4, %c0_5, %c0_6] : memref<1x1x2x16xi32, #tpu.memory_space<vmem>>, vector<1x1x2x16xi32>
    %3 = vector.shape_cast %2 : vector<1x1x2x16xi32> to vector<2x16xi32>
    %4 = tpu.iota {dimensions = array<i32: 0>} : vector<2x16xi32>
    %c2_i32 = arith.constant 2 : i32
    %5 = vector.broadcast %c2_i32 : i32 to vector<2x16xi32>
    %6 = arith.muli %5, %4 : vector<2x16xi32>
    %c2_i32_7 = arith.constant 2 : i32
    %7 = arith.muli %c2_i32_7, %arg1 : i32
    %c4_i32 = arith.constant 4 : i32
    %8 = arith.muli %7, %c4_i32 : i32
    %9 = vector.broadcast %8 : i32 to vector<2x16xi32>
    %10 = arith.addi %6, %9 : vector<2x16xi32>
    %cst = arith.constant 0.000000e+00 : f32
    %11 = vector.broadcast %cst : f32 to vector<2x16xf32>
    %c0_i32 = arith.constant 0 : i32
    %12 = vector.broadcast %c0_i32 : i32 to vector<2x16xi32>
    %13 = arith.addi %10, %12 : vector<2x16xi32>
    %14 = arith.cmpi eq, %3, %13 : vector<2x16xi32>
    %15 = arith.select %14, %1, %11 : vector<2x16xi1>, vector<2x16xf32>
    %c1_i32 = arith.constant 1 : i32
    %16 = vector.broadcast %c1_i32 : i32 to vector<2x16xi32>
    %17 = arith.addi %10, %16 : vector<2x16xi32>
    %18 = arith.cmpi eq, %3, %17 : vector<2x16xi32>
    %19 = arith.select %18, %1, %11 : vector<2x16xi1>, vector<2x16xf32>
    %20 = tpu.concatenate %15, %19 in 1 : vector<2x16xf32>, vector<2x16xf32> -> vector<2x32xf32>
    %c0_8 = arith.constant 0 : index
    %c0_9 = arith.constant 0 : index
    %c0_10 = arith.constant 0 : index
    %c0_11 = arith.constant 0 : index
    %c0_12 = arith.constant 0 : index
    %21 = vector.load %arg6[%c0_8, %c0_9, %c0_10, %c0_11, %c0_12] : memref<1x1x2x2x32xf32, #tpu.memory_space<vmem>>, vector<1x1x1x2x32xf32>
    %22 = vector.shape_cast %21 : vector<1x1x1x2x32xf32> to vector<2x32xf32>
    %23 = vector.shape_cast %20 : vector<2x32xf32> to vector<1x1x1x2x32xf32>
    tpu.vector_store %arg6[%c0_8, %c0_9, %c0_10, %c0_11, %c0_12], %23 {strides = array<i32>} : memref<1x1x2x2x32xf32, #tpu.memory_space<vmem>>, vector<1x1x1x2x32xf32>,
    %c4_i32_13 = arith.constant 4 : i32
    %24 = vector.broadcast %c4_i32_13 : i32 to vector<2x16xi32>
    %25 = arith.addi %10, %24 : vector<2x16xi32>
    %26 = arith.cmpi eq, %3, %25 : vector<2x16xi32>
    %27 = arith.select %26, %1, %11 : vector<2x16xi1>, vector<2x16xf32>
    %c5_i32 = arith.constant 5 : i32
    %28 = vector.broadcast %c5_i32 : i32 to vector<2x16xi32>
    %29 = arith.addi %10, %28 : vector<2x16xi32>
    %30 = arith.cmpi eq, %3, %29 : vector<2x16xi32>
    %31 = arith.select %30, %1, %11 : vector<2x16xi1>, vector<2x16xf32>
    %32 = tpu.concatenate %27, %31 in 1 : vector<2x16xf32>, vector<2x16xf32> -> vector<2x32xf32>
    %c0_14 = arith.constant 0 : index
    %c0_15 = arith.constant 0 : index
    %c1 = arith.constant 1 : index
    %c0_16 = arith.constant 0 : index
    %c0_17 = arith.constant 0 : index
    %33 = vector.load %arg6[%c0_14, %c0_15, %c1, %c0_16, %c0_17] : memref<1x1x2x2x32xf32, #tpu.memory_space<vmem>>, vector<1x1x1x2x32xf32>
    %34 = vector.shape_cast %33 : vector<1x1x1x2x32xf32> to vector<2x32xf32>
    %35 = vector.shape_cast %32 : vector<2x32xf32> to vector<1x1x1x2x32xf32>
    tpu.vector_store %arg6[%c0_14, %c0_15, %c1, %c0_16, %c0_17], %35 {strides = array<i32>} : memref<1x1x2x2x32xf32, #tpu.memory_space<vmem>>, vector<1x1x1x2x32xf32>,
    return
  }
  func.func @transform_0(%arg0: i32, %arg1: i32) -> (i32, i32, i32, i32) {
    %c0_i32 = arith.constant 0 : i32
    %c0_i32_0 = arith.constant 0 : i32
    %c0_i32_1 = arith.constant 0 : i32
    return %arg0, %arg1, %c0_i32, %c0_i32_0 : i32, i32, i32, i32
  }
  func.func @transform_1(%arg0: i32, %arg1: i32) -> (i32, i32, i32, i32) {
    %c0_i32 = arith.constant 0 : i32
    %c0_i32_0 = arith.constant 0 : i32
    %c0_i32_1 = arith.constant 0 : i32
    return %arg0, %arg1, %c0_i32, %c0_i32_0 : i32, i32, i32, i32
  }
  func.func @transform_2(%arg0: i32, %arg1: i32) -> (i32, i32) {
    %c0_i32 = arith.constant 0 : i32
    %c0_i32_0 = arith.constant 0 : i32
    %c0_i32_1 = arith.constant 0 : i32
    return %c0_i32, %c0_i32_0 : i32, i32
  }
  func.func @transform_3(%arg0: i32, %arg1: i32) -> (i32, i32) {
    %c0_i32 = arith.constant 0 : i32
    %c0_i32_0 = arith.constant 0 : i32
    %c0_i32_1 = arith.constant 0 : i32
    return %c0_i32, %c0_i32_0 : i32, i32
  }
  func.func @transform_4(%arg0: i32, %arg1: i32) -> (i32, i32, i32, i32, i32) {
    %c0_i32 = arith.constant 0 : i32
    %c0_i32_0 = arith.constant 0 : i32
    %c0_i32_1 = arith.constant 0 : i32
    %c0_i32_2 = arith.constant 0 : i32
    return %arg0, %arg1, %c0_i32, %c0_i32_0, %c0_i32_1 : i32, i32, i32, i32, i32
  }
}

</mosaic_0001>

<llo_original>
// kernel: tpu_custom_call.1
$region0: #{tpu_custom_call.1}
  #allocation0 [shape = 'u32[]', space=smem, size = 0x4, offset = 0x4, fixed_abs, tag = 'smem constant byte address 0x4 - core index']
  #allocation1 [shape = 'u32[144,128]{1,0:T(1,128)}', space=vmem, size = 0x12000, scoped, tag = 'internal scratch']
  %s0 = inlined_call_operand.hbm [shape: f32[2,2,2,16], index: 0, kind: input, shape index: {}]
  %s1 = inlined_call_operand.hbm [shape: s32[2,2,2,16], index: 1, kind: input, shape index: {}]
  %s2 = inlined_call_operand.vmem [shape: f32[1,16], index: 2, kind: input, shape index: {}]
  %s3 = inlined_call_operand.vmem [shape: f32[1,16], index: 3, kind: input, shape index: {}]
  %s4 = inlined_call_operand.hbm [shape: f32[2,2,2,2,32], index: 4, kind: output, shape index: {}]
  %s5 = sld [smem:[#allocation0]]
  $region57: #{tpu_custom_call.1} parent=0
    _
  %s7 = ssub.s32 1, %s5
  %s8 = scalar_select 0, %s7, %s5
  $region1: #{tpu_custom_call.1} parent=0
    #allocation2 [shape = 'u8[2048]{0}', space=vmem, size = 0x800, scoped, tag = 'input window, operand 0']
    #allocation3 [shape = 's32[2]{0}', space=sflag, size = 0x8, scoped, tag = 'scoped memory for tpu_custom_call.1']
    #allocation4 [shape = 's32[2]{0}', space=sflag, size = 0x8, scoped, tag = 'scoped memory for tpu_custom_call.1']
    #allocation5 [shape = 'u8[2048]{0}', space=vmem, size = 0x800, scoped, tag = 'input window, operand 1']
    #allocation6 [shape = 's32[2]{0}', space=sflag, size = 0x8, scoped, tag = 'scoped memory for tpu_custom_call.1']
    #allocation7 [shape = 'u8[4096]{0}', space=vmem, size = 0x1000, scoped, tag = 'output window, operand 0']
    %9 = vsyncpa [#allocation3], 0
    %s10 = scalar_lea.sflag [#allocation3], 1
    %11 = vsyncpa %s10, 0
    %12 = vsyncpa [#allocation6], 0
    %s13 = scalar_lea.sflag [#allocation6], 1
    %14 = vsyncpa %s13, 0
    %15 = vsyncpa [#allocation4], 0
    %s16 = scalar_lea.sflag [#allocation4], 1
    %17 = vsyncpa %s16, 0
    loop: start=0, step=1, limit=6
    $region2: #{tpu_custom_call.1} parent=1 // loop_pre_header
      _
    $region3: #{tpu_custom_call.1} parent=1 // loop_header
      %s19 = sphi 0, %s23
      %p20 = scmp.ge.s32.totalorder %s19, 6
      %s26 = sphi 0, %s38
      %s27 = sphi 0, %s34
      %s28 = sphi 0, %s26
      %s29 = sphi 0, %s27
      %s30 = sphi 0, %s28
      %s31 = sphi 0, %s29
      %s43 = sphi 0, %s45
      %s46 = sphi 0, %s43
      %s47 = sphi 0, %s46
      %s63 = sphi 0, %s47
      %s71 = sphi 0, %s73
      %s74 = sphi 0, %s71
      %s75 = sphi 0, %s74
      %s91 = sphi 0, %s75
      %s95 = sphi 0, %s95
      %s97 = sphi 0, %s95
      %s98 = sphi 0, %s97
      %s112 = sphi 0, %s98
      %s116 = sphi 0, %s116
      %s118 = sphi 0, %s116
      %s119 = sphi 0, %s118
      %s133 = sphi 0, %s119
      %s141 = sphi 0, %s143
      %s144 = sphi 0, %s141
      %s145 = sphi 0, %s144
      %s161 = sphi 0, %s145
    $region4: #{tpu_custom_call.1} parent=1 // loop_header_branch
      %22 = sbr.rel (%p20) target = $region8
    $region5: #{tpu_custom_call.1} parent=1 // loop_body
      %s24 = ssub.s32 %s19, 1
      %s25 = ssub.s32 %s19, 2
      %s32 = sadd.s32 1, %s27
      %p33 = scmp.ge.s32.totalorder %s32, 2
      %s34 = scalar_select %p33, 0, %s32
      %s35 = sadd.s32 1, %s26
      %s36 = scalar_select %p33, %s35, %s26
      %p37 = scmp.ge.s32.totalorder %s36, 2
      %s38 = scalar_select %p37, 0, %s36
      %s39 = ssub.s32 %s26, %s38
      %s40 = ssub.s32 %s27, %s34
      %s41 = sor.u32 %s39, %s40
      %p42 = scmp.eq.s32.totalorder %s41, 0
      %s44 = sadd.s32 %s43, 1
      %s45 = scalar_select %p42, %s43, %s44
      %p48 = pneg %p42
      %p49 = scmp.eq.s32.totalorder %s19, 3
      %p50 = por %p48, %p49
      %p51 = scmp.ne.s32.totalorder %s43, %s46
      %p52 = scmp.eq.s32.totalorder %s19, 0
      %p53 = por %p51, %p52
      %p54 = scmp.ne.s32.totalorder %s43, %s46
      %p55 = scmp.eq.s32.totalorder %s24, 3
      %p56 = por %p54, %p55
      %p57 = scmp.ne.s32.totalorder %s46, %s47
      %p58 = scmp.eq.s32.totalorder %s24, 0
      %p59 = por %p57, %p58
      %p60 = scmp.ne.s32.totalorder %s46, %s47
      %p61 = scmp.eq.s32.totalorder %s25, 3
      %p62 = por %p60, %p61
      %p64 = scmp.ne.s32.totalorder %s47, %s63
      %p65 = scmp.eq.s32.totalorder %s25, 0
      %p66 = por %p64, %p65
      %s67 = ssub.s32 %s26, %s38
      %s68 = ssub.s32 %s27, %s34
      %s69 = sor.u32 %s67, %s68
      %p70 = scmp.eq.s32.totalorder %s69, 0
      %s72 = sadd.s32 %s71, 1
      %s73 = scalar_select %p70, %s71, %s72
      %p76 = pneg %p70
      %p77 = scmp.eq.s32.totalorder %s19, 3
      %p78 = por %p76, %p77
      %p79 = scmp.ne.s32.totalorder %s71, %s74
      %p80 = scmp.eq.s32.totalorder %s19, 0
      %p81 = por %p79, %p80
      %p82 = scmp.ne.s32.totalorder %s71, %s74
      %p83 = scmp.eq.s32.totalorder %s24, 3
      %p84 = por %p82, %p83
      %p85 = scmp.ne.s32.totalorder %s74, %s75
      %p86 = scmp.eq.s32.totalorder %s24, 0
      %p87 = por %p85, %p86
      %p88 = scmp.ne.s32.totalorder %s74, %s75
      %p89 = scmp.eq.s32.totalorder %s25, 3
      %p90 = por %p88, %p89
      %p92 = scmp.ne.s32.totalorder %s75, %s91
      %p93 = scmp.eq.s32.totalorder %s25, 0
      %p94 = por %p92, %p93
      %s96 = sadd.s32 %s95, 1
      %p99 = scmp.eq.s32.totalorder %s19, 3
      %p100 = scmp.ne.s32.totalorder %s95, %s97
      %p101 = scmp.eq.s32.totalorder %s19, 0
      %p102 = por %p100, %p101
      %p103 = scmp.ne.s32.totalorder %s95, %s97
      %p104 = scmp.eq.s32.totalorder %s24, 3
      %p105 = por %p103, %p104
      %p106 = scmp.ne.s32.totalorder %s97, %s98
      %p107 = scmp.eq.s32.totalorder %s24, 0
      %p108 = por %p106, %p107
      %p109 = scmp.ne.s32.totalorder %s97, %s98
      %p110 = scmp.eq.s32.totalorder %s25, 3
      %p111 = por %p109, %p110
      %p113 = scmp.ne.s32.totalorder %s98, %s112
      %p114 = scmp.eq.s32.totalorder %s25, 0
      %p115 = por %p113, %p114
      %s117 = sadd.s32 %s116, 1
      %p120 = scmp.eq.s32.totalorder %s19, 3
      %p121 = scmp.ne.s32.totalorder %s116, %s118
      %p122 = scmp.eq.s32.totalorder %s19, 0
      %p123 = por %p121, %p122
      %p124 = scmp.ne.s32.totalorder %s116, %s118
      %p125 = scmp.eq.s32.totalorder %s24, 3
      %p126 = por %p124, %p125
      %p127 = scmp.ne.s32.totalorder %s118, %s119
      %p128 = scmp.eq.s32.totalorder %s24, 0
      %p129 = por %p127, %p128
      %p130 = scmp.ne.s32.totalorder %s118, %s119
      %p131 = scmp.eq.s32.totalorder %s25, 3
      %p132 = por %p130, %p131
      %p134 = scmp.ne.s32.totalorder %s119, %s133
      %p135 = scmp.eq.s32.totalorder %s25, 0
      %p136 = por %p134, %p135
      %s137 = ssub.s32 %s26, %s38
      %s138 = ssub.s32 %s27, %s34
      %s139 = sor.u32 %s137, %s138
      %p140 = scmp.eq.s32.totalorder %s139, 0
      %s142 = sadd.s32 %s141, 1
      %s143 = scalar_select %p140, %s141, %s142
      %p146 = pneg %p140
      %p147 = scmp.eq.s32.totalorder %s19, 3
      %p148 = por %p146, %p147
      %p149 = scmp.ne.s32.totalorder %s141, %s144
      %p150 = scmp.eq.s32.totalorder %s19, 0
      %p151 = por %p149, %p150
      %p152 = scmp.ne.s32.totalorder %s141, %s144
      %p153 = scmp.eq.s32.totalorder %s24, 3
      %p154 = por %p152, %p153
      %p155 = scmp.ne.s32.totalorder %s144, %s145
      %p156 = scmp.eq.s32.totalorder %s24, 0
      %p157 = por %p155, %p156
      %p158 = scmp.ne.s32.totalorder %s144, %s145
      %p159 = scmp.eq.s32.totalorder %s25, 3
      %p160 = por %p158, %p159
      %p162 = scmp.ne.s32.totalorder %s145, %s161
      %p163 = scmp.eq.s32.totalorder %s25, 0
      %p164 = por %p162, %p163
      %p165 = scmp.le.s32.totalorder 1, %s19
      %p166 = scmp.lt.s32.totalorder %s19, 5
      %p167 = pnand %p165, %p166
      %p168 = pneg %p167
      // Predicated region
      $region9: #{tpu_custom_call.1} parent=5 // pred_check
        _
      $region10: #{tpu_custom_call.1} parent=5 // pred_check_branch
        %170 = sbr.rel (%p167) target = $region12
      $region11: #{tpu_custom_call.1} parent=5 // pred_region
        %s171 = ssub.s32 %s19, 1
        // Predicated region
        $region13: #{tpu_custom_call.1} parent=11 // pred_check
          %p172 = pneg %p108
        $region14: #{tpu_custom_call.1} parent=11 // pred_check_branch
          %174 = sbr.rel (%p172) target = $region16
        $region15: #{tpu_custom_call.1} parent=11 // pred_region
          _
        $region16: #{tpu_custom_call.1} parent=11 // pred_fallthru
          _
        // Predicated region
        $region17: #{tpu_custom_call.1} parent=11 // pred_check
          %p175 = pneg %p129
        $region18: #{tpu_custom_call.1} parent=11 // pred_check_branch
          %177 = sbr.rel (%p175) target = $region20
        $region19: #{tpu_custom_call.1} parent=11 // pred_region
          _
        $region20: #{tpu_custom_call.1} parent=11 // pred_fallthru
          _
      $region12: #{tpu_custom_call.1} parent=5 // pred_fallthru
        _
      %p178 = scmp.lt.s32.totalorder %s19, 4
      // Predicated region
      $region21: #{tpu_custom_call.1} parent=5 // pred_check
        %p179 = pneg %p178
      $region22: #{tpu_custom_call.1} parent=5 // pred_check_branch
        %181 = sbr.rel (%p179) target = $region24
      $region23: #{tpu_custom_call.1} parent=5 // pred_region
        // Predicated region
        $region25: #{tpu_custom_call.1} parent=23 // pred_check
          %p182 = pneg %p53
        $region26: #{tpu_custom_call.1} parent=23 // pred_check_branch
          %184 = sbr.rel (%p182) target = $region28
        $region27: #{tpu_custom_call.1} parent=23 // pred_region
          %s185 = sand.u32 %s43, 1
          %s186 = scalar_lea.sflag [#allocation3], %s185
          %s187 = sand.u32 %s43, 1
          %s188 = smul.addr %s187, 2
          %s189 = scalar_lea.vmem [#allocation2], %s188
          %s191 = ssub.s32 32, 32
          %192 = vsyncadd %s186, %s191
          %s193 = smul.addr %s26, 2
          %s194 = sadd.s32 %s27, %s193
          %s195 = smul.addr %s194, 32
          %s196 = scalar_lea.hbm %s0, %s195
          %s198 = sshll.u32 %s189, 4
          %s199 = int_to_ptr.vmem [resolvable:$true] %s198
          %201 = dma.hbm_to_vmem [thread:$0]  %s196, 32, %s199, %s186
        $region28: #{tpu_custom_call.1} parent=23 // pred_fallthru
          _
        // Predicated region
        $region29: #{tpu_custom_call.1} parent=23 // pred_check
          %p202 = pneg %p81
        $region30: #{tpu_custom_call.1} parent=23 // pred_check_branch
          %204 = sbr.rel (%p202) target = $region32
        $region31: #{tpu_custom_call.1} parent=23 // pred_region
          %s205 = sand.u32 %s71, 1
          %s206 = scalar_lea.sflag [#allocation6], %s205
          %s207 = sand.u32 %s71, 1
          %s208 = smul.addr %s207, 2
          %s209 = scalar_lea.vmem [#allocation5], %s208
          %s211 = ssub.s32 32, 32
          %212 = vsyncadd %s206, %s211
          %s213 = smul.addr %s26, 2
          %s214 = sadd.s32 %s27, %s213
          %s215 = smul.addr %s214, 32
          %s216 = scalar_lea.hbm %s1, %s215
          %s218 = sshll.u32 %s209, 4
          %s219 = int_to_ptr.vmem [resolvable:$true] %s218
          %221 = dma.hbm_to_vmem [thread:$0]  %s216, 32, %s219, %s206
        $region32: #{tpu_custom_call.1} parent=23 // pred_fallthru
          _
      $region24: #{tpu_custom_call.1} parent=5 // pred_fallthru
        _
      %p222 = scmp.le.s32.totalorder 1, %s19
      %p223 = scmp.lt.s32.totalorder %s19, 5
      %p224 = pnand %p222, %p223
      %p225 = pneg %p224
      // Predicated region
      $region33: #{tpu_custom_call.1} parent=5 // pred_check
        _
      $region34: #{tpu_custom_call.1} parent=5 // pred_check_branch
        %227 = sbr.rel (%p224) target = $region36
      $region35: #{tpu_custom_call.1} parent=5 // pred_region
        %s228 = ssub.s32 %s19, 1
        %s229 = sand.u32 %s46, 1
        %s230 = scalar_lea.sflag [#allocation3], %s229
        %s231 = sand.u32 %s46, 1
        %s232 = smul.addr %s231, 2
        %s233 = scalar_lea.vmem [#allocation2], %s232
        // Predicated region
        $region37: #{tpu_custom_call.1} parent=35 // pred_check
          %p234 = pneg %p59
        $region38: #{tpu_custom_call.1} parent=35 // pred_check_branch
          %236 = sbr.rel (%p234) target = $region40
        $region39: #{tpu_custom_call.1} parent=35 // pred_region
          %237 = dma.done %s230, 32
        $region40: #{tpu_custom_call.1} parent=35 // pred_fallthru
          _
        %s238 = sand.u32 %s74, 1
        %s239 = scalar_lea.sflag [#allocation6], %s238
        %s240 = sand.u32 %s74, 1
        %s241 = smul.addr %s240, 2
        %s242 = scalar_lea.vmem [#allocation5], %s241
        // Predicated region
        $region41: #{tpu_custom_call.1} parent=35 // pred_check
          %p243 = pneg %p87
        $region42: #{tpu_custom_call.1} parent=35 // pred_check_branch
          %245 = sbr.rel (%p243) target = $region44
        $region43: #{tpu_custom_call.1} parent=35 // pred_region
          %246 = dma.done %s239, 32
        $region44: #{tpu_custom_call.1} parent=35 // pred_fallthru
          _
        %s247 = sand.u32 %s46, 1
        %s248 = scalar_lea.sflag [#allocation3], %s247
        %s249 = sand.u32 %s46, 1
        %s250 = smul.addr %s249, 2
        %s251 = scalar_lea.vmem [#allocation2], %s250
        %p252 = pneg %p59
        %p253 = pneg %p56
        %s254 = sand.u32 %s74, 1
        %s255 = scalar_lea.sflag [#allocation6], %s254
        %s256 = sand.u32 %s74, 1
        %s257 = smul.addr %s256, 2
        %s258 = scalar_lea.vmem [#allocation5], %s257
        %p259 = pneg %p87
        %p260 = pneg %p84
        %p261 = pneg %p108
        %p262 = pneg %p105
        %p263 = pneg %p129
        %p264 = pneg %p126
        %p265 = pneg %p157
        %p266 = pneg %p154
        %s267 = sand.u32 %s144, 1
        %s268 = scalar_lea.sflag [#allocation4], %s267
        %s269 = sand.u32 %s144, 1
        %s270 = smul.addr %s269, 4
        %s271 = scalar_lea.vmem [#allocation7], %s270
        %v272 = vld [vmem:[%s233] sm:$0x3]
        %v273 = vld [vmem:[%s242] sm:$0x3]
        %v274 = vlaneseq
        %v275 = vshrl.u32 %v274, 7
        %v276 = vmul.u32 %v275, 2
        %s277 = smul.u32 %s29, 8
        %v278 = vstv %s277
        %v279 = vadd.s32 %v276, %v278
        %vm280 = vcmp.eq.s32.totalorder %v273, %v279
        %v281 = vsel %vm280, %v272, 0.0
        %v282 = vadd.s32 %v279, 1
        %vm283 = vcmp.eq.s32.totalorder %v273, %v282
        %v284 = vsel %vm283, %v272, 0.0
        %286 = vrot.lane.b32.xlu0 %v284, 16
        %v287 = vpop.permute.xlu0 %286
        %vm289 = vcmask 130048
        %v290 = vsel %vm289, %v281, %v287
        %vm291 = vcmask 254976
        %292 = vst.msk [vmem:[%s271] sm:$0x3] %vm291, %v290
        %v293 = vadd.s32 %v279, 4
        %vm294 = vcmp.eq.s32.totalorder %v273, %v293
        %v295 = vsel %vm294, %v272, 0.0
        %v296 = vadd.s32 %v279, 5
        %vm297 = vcmp.eq.s32.totalorder %v273, %v296
        %v298 = vsel %vm297, %v272, 0.0
        %300 = vrot.lane.b32.xlu0 %v298, 16
        %v301 = vpop.permute.xlu0 %300
        %v303 = vsel %vm289, %v295, %v301
        %s304 = scalar_lea.vmem %s271, 2 [#allocation7]
        %305 = vst.msk [vmem:[%s304] sm:$0x3] %vm291, %v303
        %s306 = sand.u32 %s144, 1
        %s307 = scalar_lea.sflag [#allocation4], %s306
        %s308 = sand.u32 %s144, 1
        %s309 = smul.addr %s308, 4
        %s310 = scalar_lea.vmem [#allocation7], %s309
        // Predicated region
        $region45: #{tpu_custom_call.1} parent=35 // pred_check
          %p311 = pneg %p154
        $region46: #{tpu_custom_call.1} parent=35 // pred_check_branch
          %313 = sbr.rel (%p311) target = $region48
        $region47: #{tpu_custom_call.1} parent=35 // pred_region
          %s315 = ssub.s32 64, 64
          %316 = vsyncadd %s307, %s315
          %s317 = smul.addr %s29, 2
          %s318 = smul.addr %s28, 4
          %s319 = sadd.s32 %s317, %s318
          %s320 = smul.addr %s319, 32
          %s321 = scalar_lea.hbm %s4, %s320
          %s322 = sshll.u32 %s310, 4
          %s323 = int_to_ptr.vmem [resolvable:$true] %s322
          %328 = dma.vmem_to_hbm [thread:$0]  %s323, 64, %s321, %s307, 32, 32, 2
        $region48: #{tpu_custom_call.1} parent=35 // pred_fallthru
          _
      $region36: #{tpu_custom_call.1} parent=5 // pred_fallthru
        _
      %p329 = scmp.le.s32.totalorder 2, %s19
      // Predicated region
      $region49: #{tpu_custom_call.1} parent=5 // pred_check
        %p330 = pneg %p329
      $region50: #{tpu_custom_call.1} parent=5 // pred_check_branch
        %332 = sbr.rel (%p330) target = $region52
      $region51: #{tpu_custom_call.1} parent=5 // pred_region
        %s333 = ssub.s32 %s19, 2
        // Predicated region
        $region53: #{tpu_custom_call.1} parent=51 // pred_check
          %p334 = pneg %p160
        $region54: #{tpu_custom_call.1} parent=51 // pred_check_branch
          %336 = sbr.rel (%p334) target = $region56
        $region55: #{tpu_custom_call.1} parent=51 // pred_region
          %s337 = sand.u32 %s145, 1
          %s338 = scalar_lea.sflag [#allocation4], %s337
          %s339 = sand.u32 %s145, 1
          %s340 = smul.addr %s339, 4
          %s341 = scalar_lea.vmem [#allocation7], %s340
          %342 = dma.done %s338, 64
        $region56: #{tpu_custom_call.1} parent=51 // pred_fallthru
          _
      $region52: #{tpu_custom_call.1} parent=5 // pred_fallthru
        _
    $region6: #{tpu_custom_call.1} parent=1 // loop_footer
      %s23 = sadd.s32 1, %s19
    $region7: #{tpu_custom_call.1} parent=1 // loop_footer_branch
      %18 = sbr.rel target = $region3
    $region8: #{tpu_custom_call.1} parent=1 // loop_exit
      _
    %343 = vsyncpa [#allocation3], 1
    %s344 = scalar_lea.sflag [#allocation3], 1
    %345 = vsyncpa %s344, 1
    %346 = vsyncpa [#allocation6], 1
    %s347 = scalar_lea.sflag [#allocation6], 1
    %348 = vsyncpa %s347, 1
    %349 = vsyncpa [#allocation4], 1
    %s350 = scalar_lea.sflag [#allocation4], 1
    %351 = vsyncpa %s350, 1

</llo_original>
